<compile_context>
chip_gen: v7x
topology: tpu7x:2x2x1
jax: 0.10.0
libtpu: 0.0.40
codegen_flags: <defaults>
</compile_context>

<pallas_src>
import math
from functools import partial

import jax
import jax.numpy as jnp
from jax.experimental import pallas as pl
from jax.experimental.pallas import tpu as pltpu


def _build_pe(max_len: int, d_model: int) -> jnp.ndarray:
    """Replicates the buffer construction in PositionalEncoding.__init__ (as (max_len, d_model))."""
    position = jnp.arange(0, max_len, dtype=jnp.float32)[:, None]           # (L, 1)
    even_pos = jnp.arange(0, d_model, 2, dtype=jnp.float32)
    odd_pos = jnp.arange(1, d_model, 2, dtype=jnp.float32)
    div_eve = 1.0 / jnp.power(10.0, 4.0 * even_pos / d_model)
    div_odd = 1.0 / jnp.power(10.0, 4.0 * (odd_pos - 1.0) / d_model)
    pe = jnp.zeros((max_len, d_model), dtype=jnp.float32)
    pe = pe.at[:, 0::2].set(jnp.sin(position / div_eve))
    pe = pe.at[:, 1::2].set(jnp.sin(position / div_odd))
    # torch does .unsqueeze(0).transpose(0,1) -> (max_len, 1, d_model); the size-1
    # axis only exists for broadcasting, so we keep (max_len, d_model) here.
    return pe


def _pos_enc_add_kernel(x_ref, p_ref, o_ref, *, batch: int):
    # x_ref: (ts, B*D)   p_ref: (ts, D) f32   o_ref: (ts, B*D)
    proj = p_ref[...]
    if batch > 1:
        # Replicate along lanes so proj matches the row-major (S, B, D)->(S, B*D) view.
        proj = jnp.tile(proj, (1, batch))                         # (ts, B*D)
    # Accumulate in f32, cast once at the store (safe for bf16 x/out).
    o_ref[...] = (x_ref[...].astype(jnp.float32) + proj).astype(o_ref.dtype)


def _choose_seq_tile(seq_len: int, row_elems_io: int, io_itemsize: int,
                     proj_cols: int, vmem_budget_bytes: int = 20 * 1024 * 1024) -> int:
    """Largest seq tile whose double-buffered x-in/out + proj tiles fit the VMEM budget."""
    # 2x double-buffered (ts, B*D) tiles (x in, out) + double-buffered (ts, D) f32 proj.
    bytes_per_row = 4 * row_elems_io * io_itemsize + 2 * proj_cols * 4
    ts = max(8, vmem_budget_bytes // max(bytes_per_row, 1))
    ts = min(ts, seq_len)
    if seq_len >= 16:
        # Keep >= 2 grid steps so DMA prefetch/writeback overlap and megacore engage.
        ts = min(ts, pl.cdiv(seq_len, 2))
    if ts >= 8:
        ts = (ts // 8) * 8       # sublane multiple
    return max(ts, 1)


def positional_encoding_forward(x: jnp.ndarray, pe: jnp.ndarray, w: jnp.ndarray,
                                *, seq_tile: int | None = None,
                                donate_x: bool = False) -> jnp.ndarray:
    """x: (S, B, D); pe: (max_len, D); w: (D, D) torch Linear weight (out, in)."""
    S, B, D = x.shape
    max_len = pe.shape[0]
    if S > max_len:
        raise ValueError(f"sequence length {S} exceeds max_len {max_len}")

    # Hoisted projection Linear(pe[:S]) = pe[:S] @ W^T -- one tiny XLA matmul.
    proj = jnp.dot(pe[:S].astype(jnp.float32), w.T.astype(jnp.float32))     # (S, D) f32

    bd = B * D
    x2 = x.reshape(S, bd)                          # free row-major view, lane-dense

    itemsize = x.dtype.itemsize
    ts = seq_tile if seq_tile is not None else _choose_seq_tile(S, bd, itemsize, D)
    ts = min(ts, S)
    grid = (pl.cdiv(S, ts),)                       # partial trailing block is handled by Pallas

    out2 = pl.pallas_call(
        partial(_pos_enc_add_kernel, batch=B),
        out_shape=jax.ShapeDtypeStruct((S, bd), x.dtype),
        grid_spec=pltpu.PrefetchScalarGridSpec(
            num_scalar_prefetch=0,
            grid=grid,
            in_specs=[
                pl.BlockSpec((ts, bd), lambda i: (i, 0)),    # x tile (streamed, contiguous)
                pl.BlockSpec((ts, D), lambda i: (i, 0)),     # proj tile (streamed, small)
            ],
            out_specs=pl.BlockSpec((ts, bd), lambda i: (i, 0)),
        ),
        compiler_params=pltpu.CompilerParams(
            dimension_semantics=("parallel",),       # independent seq tiles -> megacore on v7x
            vmem_limit_bytes=32 * 1024 * 1024,       # raise v5e's 16 MiB default; fits v7x's 64 MiB
        ),
        input_output_aliases=({0: 0} if donate_x else {}),   # optional in-place overwrite of x
    )(x2, proj)

    return out2.reshape(S, B, D)


def reference_forward(x, pe, w):
    proj = pe[: x.shape[0], :] @ w.T
    return x + proj[:, None, :]


if __name__ == "__main__":
    d_model = 32
    max_len = 10
    seq = 8
    batch = 2

    key = jax.random.PRNGKey(0)
    kx, kw = jax.random.split(key)

    # deterministic parameter init (matches nn.Linear default U(-1/sqrt(d), 1/sqrt(d)))
    bound = 1.0 / math.sqrt(d_model)
    w = jax.random.uniform(kw, (d_model, d_model), jnp.float32, -bound, bound)

    pe = _build_pe(max_len, d_model)
    x = jax.random.normal(kx, (seq, batch, d_model), jnp.float32)

    out = positional_encoding_forward(x, pe, w)
    out = jax.block_until_ready(out)

    ref = reference_forward(x, pe, w)
    assert out.shape == (seq, batch, d_model)
    assert jnp.allclose(out, ref, atol=1e-5, rtol=1e-5)

    print("KERNEL_OK")
</pallas_src>

<mosaic_0001>
module attributes {stable_mosaic.version = 11 : i64} {
  func.func @_pos_enc_add_kernel(%arg0: i32, %arg1: memref<8x64xf32, #tpu.memory_space<vmem>>, %arg2: memref<8x32xf32, #tpu.memory_space<vmem>>, %arg3: memref<8x64xf32, #tpu.memory_space<vmem>>) attributes {dimension_semantics = [#tpu.dimension_semantics<parallel>], iteration_bounds = array<i64: 1>, scalar_prefetch = 0 : i64, scratch_operands = 0 : i64, tpu.core_type = #tpu.core_type<tc>, window_params = [{transform_indices = @transform_0, window_bounds = array<i64: 8, 64>}, {transform_indices = @transform_1, window_bounds = array<i64: 8, 32>}, {transform_indices = @transform_2, window_bounds = array<i64: 8, 64>}]} {
    %c0 = arith.constant 0 : index
    %c0_0 = arith.constant 0 : index
    %0 = vector.load %arg2[%c0, %c0_0] : memref<8x32xf32, #tpu.memory_space<vmem>>, vector<8x32xf32>
    %1 = tpu.concatenate %0, %0 in 1 : vector<8x32xf32>, vector<8x32xf32> -> vector<8x64xf32>
    %c0_1 = arith.constant 0 : index
    %c0_2 = arith.constant 0 : index
    %2 = vector.load %arg1[%c0_1, %c0_2] : memref<8x64xf32, #tpu.memory_space<vmem>>, vector<8x64xf32>
    %3 = arith.addf %2, %1 : vector<8x64xf32>
    %c0_3 = arith.constant 0 : index
    %c0_4 = arith.constant 0 : index
    %4 = vector.load %arg3[%c0_3, %c0_4] : memref<8x64xf32, #tpu.memory_space<vmem>>, vector<8x64xf32>
    tpu.vector_store %arg3[%c0_3, %c0_4], %3 {strides = array<i32>} : memref<8x64xf32, #tpu.memory_space<vmem>>, vector<8x64xf32>,
    return
  }
  func.func @transform_0(%arg0: i32) -> (i32, i32) {
    %c0_i32 = arith.constant 0 : i32
    %c0_i32_0 = arith.constant 0 : i32
    return %arg0, %c0_i32 : i32, i32
  }
  func.func @transform_1(%arg0: i32) -> (i32, i32) {
    %c0_i32 = arith.constant 0 : i32
    %c0_i32_0 = arith.constant 0 : i32
    return %arg0, %c0_i32 : i32, i32
  }
  func.func @transform_2(%arg0: i32) -> (i32, i32) {
    %c0_i32 = arith.constant 0 : i32
    %c0_i32_0 = arith.constant 0 : i32
    return %arg0, %c0_i32 : i32, i32
  }
}

</mosaic_0001>

<llo_original>
// kernel: tpu_custom_call.1
$region0: #{tpu_custom_call.1}
  #allocation0 [shape = 'u32[]', space=smem, size = 0x4, offset = 0x4, fixed_abs, tag = 'smem constant byte address 0x4 - core index']
  #allocation1 [shape = 'u32[144,128]{1,0:T(1,128)}', space=vmem, size = 0x12000, scoped, tag = 'internal scratch']
  %s0 = inlined_call_operand.hbm [shape: f32[8,64], index: 0, kind: input, shape index: {}]
  %s1 = inlined_call_operand.hbm [shape: f32[8,32], index: 1, kind: input, shape index: {}]
  %s2 = inlined_call_operand.hbm [shape: f32[8,64], index: 2, kind: output, shape index: {}]
  %s3 = sld [smem:[#allocation0]]
  $region26: #{tpu_custom_call.1} parent=0
    _
  %s5 = ssub.s32 1, %s3
  %s6 = scalar_select 0, %s5, %s3
  $region1: #{tpu_custom_call.1} parent=0
    #allocation2 [shape = 'u8[4096]{0}', space=vmem, size = 0x1000, scoped, tag = 'input window, operand 0, single buffered']
    #allocation3 [shape = 's32[1]{0}', space=sflag, size = 0x4, scoped, tag = 'scoped memory for tpu_custom_call.1']
    #allocation4 [shape = 's32[1]{0}', space=sflag, size = 0x4, scoped, tag = 'scoped memory for tpu_custom_call.1']
    #allocation5 [shape = 'u8[4096]{0}', space=vmem, size = 0x1000, scoped, tag = 'input window, operand 1, single buffered']
    #allocation6 [shape = 's32[1]{0}', space=sflag, size = 0x4, scoped, tag = 'scoped memory for tpu_custom_call.1']
    #allocation7 [shape = 'u8[4096]{0}', space=vmem, size = 0x1000, scoped, tag = 'output window, operand 0, single buffered']
    %7 = vsyncpa [#allocation3], 0
    %8 = vsyncpa [#allocation6], 0
    %9 = vsyncpa [#allocation4], 0
    // Predicated region
    $region2: #{tpu_custom_call.1} parent=1 // pred_check
      _
    $region3: #{tpu_custom_call.1} parent=1 // pred_check_branch
      %11 = sbr.rel (0) target = $region5
    $region4: #{tpu_custom_call.1} parent=1 // pred_region
      %s13 = ssub.s32 128, 128
      %14 = vsyncadd [#allocation3], %s13
      %s16 = sshll.u32 [#allocation2], 4
      %s17 = int_to_ptr.vmem [resolvable:$true] %s16
      %19 = dma.hbm_to_vmem [thread:$0]  %s0, 128, %s17, [#allocation3]
    $region5: #{tpu_custom_call.1} parent=1 // pred_fallthru
      _
    // Predicated region
    $region6: #{tpu_custom_call.1} parent=1 // pred_check
      _
    $region7: #{tpu_custom_call.1} parent=1 // pred_check_branch
      %21 = sbr.rel (0) target = $region9
    $region8: #{tpu_custom_call.1} parent=1 // pred_region
      %s23 = ssub.s32 128, 128
      %24 = vsyncadd [#allocation6], %s23
      %s26 = sshll.u32 [#allocation5], 4
      %s27 = int_to_ptr.vmem [resolvable:$true] %s26
      %29 = dma.hbm_to_vmem [thread:$0]  %s1, 128, %s27, [#allocation6]
    $region9: #{tpu_custom_call.1} parent=1 // pred_fallthru
      _
    // Predicated region
    $region10: #{tpu_custom_call.1} parent=1 // pred_check
      _
    $region11: #{tpu_custom_call.1} parent=1 // pred_check_branch
      %31 = sbr.rel (0) target = $region13
    $region12: #{tpu_custom_call.1} parent=1 // pred_region
      %32 = dma.done [#allocation3], 128
    $region13: #{tpu_custom_call.1} parent=1 // pred_fallthru
      _
    // Predicated region
    $region14: #{tpu_custom_call.1} parent=1 // pred_check
      _
    $region15: #{tpu_custom_call.1} parent=1 // pred_check_branch
      %34 = sbr.rel (0) target = $region17
    $region16: #{tpu_custom_call.1} parent=1 // pred_region
      %35 = dma.done [#allocation6], 128
    $region17: #{tpu_custom_call.1} parent=1 // pred_fallthru
      _
    %v36 = vld [vmem:[#allocation5] sm:$0xff]
    %38 = vrot.lane.b32.xlu0 %v36, 32
    %v39 = vpop.permute.xlu0 %38
    %vm41 = vcmask 261120
    %v42 = vsel %vm41, %v36, %v39
    %v43 = vld [vmem:[#allocation2] sm:$0xff]
    %v44 = vadd.f32 %v43, %v42
    %vm45 = vcmask 523264
    %46 = vst.msk [vmem:[#allocation7] sm:$0xff] %vm45, %v44
    // Predicated region
    $region18: #{tpu_custom_call.1} parent=1 // pred_check
      _
    $region19: #{tpu_custom_call.1} parent=1 // pred_check_branch
      %48 = sbr.rel (0) target = $region21
    $region20: #{tpu_custom_call.1} parent=1 // pred_region
      %s50 = ssub.s32 128, 128
      %51 = vsyncadd [#allocation4], %s50
      %s53 = sshll.u32 [#allocation7], 4
      %s54 = int_to_ptr.vmem [resolvable:$true] %s53
      %56 = dma.vmem_to_hbm [thread:$0]  %s54, 128, %s2, [#allocation4]
    $region21: #{tpu_custom_call.1} parent=1 // pred_fallthru
      _
    // Predicated region
    $region22: #{tpu_custom_call.1} parent=1 // pred_check
      _
    $region23: #{tpu_custom_call.1} parent=1 // pred_check_branch
      %58 = sbr.rel (0) target = $region25
    $region24: #{tpu_custom_call.1} parent=1 // pred_region
      %59 = dma.done [#allocation4], 128
    $region25: #{tpu_custom_call.1} parent=1 // pred_fallthru
      _
    %60 = vsyncpa [#allocation3], 1
    %61 = vsyncpa [#allocation6], 1
    %62 = vsyncpa [#allocation4], 1

</llo_original>
